<compile_context>
chip_gen: v5e
topology: v5e:2x2
jax: 0.10.0
libtpu: 0.0.40
codegen_flags: <defaults>
</compile_context>

<pallas_src>
import math

import jax
import jax.numpy as jnp
from jax import lax
from jax.experimental import pallas as pl
from jax.experimental.pallas import tpu as pltpu


def _make_embed_kernel(bt):
    """bt = static number of batch rows handled per grid step (small, unrolled)."""

    def _embed_kernel(idx_ref, wt_ref, o_ref):
        # idx_ref: (Bt, TM)    int32 -- lane-dense rows of flattened spatial indices
        # wt_ref:  (E, n_cat)  f32   -- max_norm-clipped table, pre-transposed
        # o_ref:   (Bt, E, TM) f32   -- NCHW tile: E on sublanes, TM on lanes
        n_cat = wt_ref.shape[1]
        tm = idx_ref.shape[1]

        # Categories on the sublane axis; hoisted out of the per-row loop.
        cats = lax.broadcasted_iota(jnp.int32, (n_cat, tm), 0)
        wt = wt_ref[...]

        for b in range(bt):  # static, small (<= 32) -> fully unrolled
            row = idx_ref[pl.ds(b, 1), :]                        # (1, TM)
            onehot = (cats == row).astype(jnp.float32)           # (n_cat, TM)
            # Gather-as-matmul on the MXU: (E, n_cat) @ (n_cat, TM) -> (E, TM).
            # Lane-dense output slab => plain vst (masked only on a ragged
            # last spatial tile, which Pallas handles).
            o_ref[b] = jnp.dot(wt, onehot, preferred_element_type=jnp.float32)

    return _embed_kernel


def grid_embedding_forward(x_idx, weight, *, tile_m=8192, max_batch_block=32):
    """x_idx: (B, H, W) int category grid.  weight: (n_cat, E) f32 table.

    Returns (B, E, H, W) float32, matching GridEmbedding.forward (NCHW)."""
    B, H, W = x_idx.shape
    n_cat, E = weight.shape
    M = H * W

    # ---- grid-invariant preprocessing, hoisted out of the grid loop ---------
    # nn.Embedding(max_norm=1.0): rows with L2 norm > 1 rescaled to norm 1
    # (PyTorch renorm uses eps=1e-7).  Done once on the tiny (n_cat, E) table,
    # then transposed to (E, n_cat) so the kernel emits NCHW tiles directly.
    weight = weight.astype(jnp.float32)
    norm = jnp.sqrt(jnp.sum(weight * weight, axis=-1, keepdims=True))
    scale = jnp.where(norm > 1.0, 1.0 / (norm + 1e-7), 1.0)
    w_t = (weight * scale).T                                      # (E, n_cat)

    idx = x_idx.reshape(B, M).astype(jnp.int32)

    # ---- tiling of the flattened spatial axis (no padding, ragged OK) -------
    if M > tile_m:
        # Large spatial grids: 128-aligned lane tiles, one batch row per step.
        tm = max(128, (tile_m // 128) * 128)
        bt = 1
    else:
        # Small spatial grids: full-row (full-dim, lane-dense) tiles; amortize
        # the ~0.35 us per-step overhead by blocking several batch rows.
        tm = M
        bt = max(1, min(B, tile_m // max(M, 1), max_batch_block))
    m_tiles = -(-M // tm)       # ragged last tile is masked by Pallas
    b_tiles = -(-B // bt)

    # ---- VMEM budget: actual double-buffered footprint + ~25% headroom ------
    idx_bytes = 2 * bt * tm * 4              # idx tile, double-buffered
    out_bytes = 2 * bt * E * tm * 4          # out tile, double-buffered
    table_bytes = 2 * E * n_cat * 4          # resident table (default 2 bufs)
    onehot_bytes = 2 * n_cat * tm * 4        # one-hot intermediates in flight
    footprint = idx_bytes + out_bytes + table_bytes + onehot_bytes
    vmem_limit = max(int(footprint * 1.25) + (1 << 20), 4 << 20)

    cost = pl.CostEstimate(
        flops=2 * B * M * n_cat * E,
        transcendentals=0,
        bytes_accessed=4 * B * M + 4 * B * M * E + 4 * n_cat * E,
    )

    out = pl.pallas_call(
        _make_embed_kernel(bt),
        out_shape=jax.ShapeDtypeStruct((B, E, M), jnp.float32),
        grid_spec=pltpu.PrefetchScalarGridSpec(
            num_scalar_prefetch=0,
            grid=(b_tiles, m_tiles),
            in_specs=[
                pl.BlockSpec((bt, tm), lambda bi, mi: (bi, mi)),   # indices
                # Table is tiny and grid-invariant; kept resident.
                # (Could be single-buffered via pipeline_mode once n_cat grows.)
                pl.BlockSpec((E, n_cat), lambda bi, mi: (0, 0)),
            ],
            out_specs=pl.BlockSpec((bt, E, tm), lambda bi, mi: (bi, 0, mi)),
        ),
        compiler_params=pltpu.CompilerParams(
            # Both axes independent => megacore / v7x dual-TC shardable.
            dimension_semantics=("parallel", "parallel"),
            vmem_limit_bytes=vmem_limit,
        ),
        cost_estimate=cost,
    )(idx, w_t)                                                    # (B, E, M)

    # (B, E, H*W) -> (B, E, H, W): contiguous reshape, no transpose, no slice.
    return out.reshape(B, E, H, W)


def _reference(x_idx, weight):
    # Pure-JAX reference of the PyTorch forward semantics.
    norm = jnp.sqrt(jnp.sum(weight * weight, axis=-1, keepdims=True))
    scale = jnp.where(norm > 1.0, 1.0 / (norm + 1e-7), 1.0)
    w = weight * scale
    emb = jnp.take(w, x_idx, axis=0)            # (B, H, W, E)
    return emb.transpose(0, 3, 1, 2)            # (B, E, H, W)


if __name__ == "__main__":
    key = jax.random.PRNGKey(0)
    k_idx, k_w, k_idx2, k_w2 = jax.random.split(key, 4)

    # Small shapes consistent with the module: a (B, H, W) grid of categories.
    B, H, W = 2, 16, 16
    n_cat, embedding_dim = 16, 32

    x = jax.random.randint(k_idx, (B, H, W), 0, n_cat, dtype=jnp.int32)
    # nn.init.normal_(weight, mean=0, std=1/sqrt(embedding_dim))
    weight = (jax.random.normal(k_w, (n_cat, embedding_dim), dtype=jnp.float32)
              / math.sqrt(embedding_dim))

    out = grid_embedding_forward(x, weight)
    out = jax.block_until_ready(out)
    ref = _reference(x, weight)
    assert out.shape == (B, embedding_dim, H, W)
    assert jnp.allclose(out, ref, atol=1e-5, rtol=1e-5)

    # Second check: exercises the ragged-last-tile (no-pad) path and a
    # non-128-multiple spatial size by forcing a small tile.
    B2, H2, W2 = 3, 15, 20
    n_cat2, e2 = 10, 16
    x2 = jax.random.randint(k_idx2, (B2, H2, W2), 0, n_cat2, dtype=jnp.int32)
    w2 = (jax.random.normal(k_w2, (n_cat2, e2), dtype=jnp.float32)
          / math.sqrt(e2))
    out2 = jax.block_until_ready(grid_embedding_forward(x2, w2, tile_m=128))
    ref2 = _reference(x2, w2)
    assert out2.shape == (B2, e2, H2, W2)
    assert jnp.allclose(out2, ref2, atol=1e-5, rtol=1e-5)

    print("KERNEL_OK")
</pallas_src>

<mosaic_0001>
module attributes {stable_mosaic.version = 11 : i64} {
  func.func @_embed_kernel(%arg0: i32, %arg1: i32, %arg2: memref<2x256xi32, #tpu.memory_space<vmem>>, %arg3: memref<32x16xf32, #tpu.memory_space<vmem>>, %arg4: memref<2x32x256xf32, #tpu.memory_space<vmem>>) attributes {dimension_semantics = [#tpu.dimension_semantics<parallel>, #tpu.dimension_semantics<parallel>], iteration_bounds = array<i64: 1, 1>, scalar_prefetch = 0 : i64, scratch_operands = 0 : i64, tpu.core_type = #tpu.core_type<tc>, window_params = [{transform_indices = @transform_0, window_bounds = array<i64: 2, 256>}, {pipeline_mode = #tpu.pipeline_mode<synchronous>, transform_indices = @transform_1, window_bounds = array<i64: 32, 16>}, {transform_indices = @transform_2, window_bounds = array<i64: 2, 32, 256>}]} {
    %0 = tpu.iota {dimensions = array<i32: 0>} : vector<16x256xi32>
    %c0 = arith.constant 0 : index
    %c0_0 = arith.constant 0 : index
    %1 = vector.load %arg3[%c0, %c0_0] : memref<32x16xf32, #tpu.memory_space<vmem>>, vector<32x16xf32>
    %c0_1 = arith.constant 0 : index
    %c0_2 = arith.constant 0 : index
    %2 = vector.load %arg2[%c0_1, %c0_2] : memref<2x256xi32, #tpu.memory_space<vmem>>, vector<1x256xi32>
    %3 = vector.broadcast %2 : vector<1x256xi32> to vector<16x256xi32>
    %4 = arith.cmpi eq, %0, %3 : vector<16x256xi32>
    %5 = arith.extui %4 : vector<16x256xi1> to vector<16x256xi32>
    %6 = arith.sitofp %5 : vector<16x256xi32> to vector<16x256xf32>
    %cst = arith.constant dense<0.000000e+00> : vector<32x256xf32>
    %7 = tpu.matmul %1, %6, %cst {dimension_numbers = #tpu.dot_dimension_numbers<[1], [0], [0], [1], [0, 0, 1, 1], [], []>} : vector<32x16xf32>, vector<16x256xf32>, vector<32x256xf32> -> vector<32x256xf32>
    %c0_3 = arith.constant 0 : index
    %c0_4 = arith.constant 0 : index
    %c0_5 = arith.constant 0 : index
    %8 = vector.load %arg4[%c0_3, %c0_4, %c0_5] : memref<2x32x256xf32, #tpu.memory_space<vmem>>, vector<1x32x256xf32>
    %9 = vector.shape_cast %8 : vector<1x32x256xf32> to vector<32x256xf32>
    %10 = vector.shape_cast %7 : vector<32x256xf32> to vector<1x32x256xf32>
    tpu.vector_store %arg4[%c0_3, %c0_4, %c0_5], %10 {strides = array<i32>} : memref<2x32x256xf32, #tpu.memory_space<vmem>>, vector<1x32x256xf32>,
    %c1 = arith.constant 1 : index
    %c0_6 = arith.constant 0 : index
    %11 = vector.load %arg2[%c1, %c0_6] : memref<2x256xi32, #tpu.memory_space<vmem>>, vector<1x256xi32>
    %12 = vector.broadcast %11 : vector<1x256xi32> to vector<16x256xi32>
    %13 = arith.cmpi eq, %0, %12 : vector<16x256xi32>
    %14 = arith.extui %13 : vector<16x256xi1> to vector<16x256xi32>
    %15 = arith.sitofp %14 : vector<16x256xi32> to vector<16x256xf32>
    %cst_7 = arith.constant dense<0.000000e+00> : vector<32x256xf32>
    %16 = tpu.matmul %1, %15, %cst_7 {dimension_numbers = #tpu.dot_dimension_numbers<[1], [0], [0], [1], [0, 0, 1, 1], [], []>} : vector<32x16xf32>, vector<16x256xf32>, vector<32x256xf32> -> vector<32x256xf32>
    %c1_8 = arith.constant 1 : index
    %c0_9 = arith.constant 0 : index
    %c0_10 = arith.constant 0 : index
    %17 = vector.load %arg4[%c1_8, %c0_9, %c0_10] : memref<2x32x256xf32, #tpu.memory_space<vmem>>, vector<1x32x256xf32>
    %18 = vector.shape_cast %17 : vector<1x32x256xf32> to vector<32x256xf32>
    %19 = vector.shape_cast %16 : vector<32x256xf32> to vector<1x32x256xf32>
    tpu.vector_store %arg4[%c1_8, %c0_9, %c0_10], %19 {strides = array<i32>} : memref<2x32x256xf32, #tpu.memory_space<vmem>>, vector<1x32x256xf32>,
    return
  }
  func.func @transform_0(%arg0: i32, %arg1: i32) -> (i32, i32) {
    %c0_i32 = arith.constant 0 : i32
    return %arg0, %arg1 : i32, i32
  }
  func.func @transform_1(%arg0: i32, %arg1: i32) -> (i32, i32) {
    %c0_i32 = arith.constant 0 : i32
    %c0_i32_0 = arith.constant 0 : i32
    %c0_i32_1 = arith.constant 0 : i32
    return %c0_i32, %c0_i32_0 : i32, i32
  }
  func.func @transform_2(%arg0: i32, %arg1: i32) -> (i32, i32, i32) {
    %c0_i32 = arith.constant 0 : i32
    %c0_i32_0 = arith.constant 0 : i32
    return %arg0, %c0_i32, %arg1 : i32, i32, i32
  }
}

</mosaic_0001>

<llo_original>
// kernel: tpu_custom_call.1
$region0: #{tpu_custom_call.1}
  #allocation0 [shape = 'u32[]', space=smem, size = 0x4, offset = 0x4, fixed_abs, tag = 'smem constant byte address 0x4 - core index']
  #allocation1 [shape = 'u32[72,128]{1,0:T(1,128)}', space=vmem, size = 0x9000, scoped, tag = 'internal scratch']
  %s0 = inlined_call_operand.vmem [shape: s32[2,256], index: 0, kind: input, shape index: {}]
  %s1 = inlined_call_operand.vmem [shape: f32[32,16], index: 1, kind: input, shape index: {}]
  %s2 = inlined_call_operand.hbm [shape: f32[2,32,256], index: 2, kind: output, shape index: {}]
  %s3 = sld [smem:[#allocation0]]
  $region18: #{tpu_custom_call.1} parent=0
    _
  %s5 = ssub.s32 1, %s3
  %s6 = scalar_select 0, %s5, %s3
  $region1: #{tpu_custom_call.1} parent=0
    #allocation2 [shape = 'u8[65536]{0}', space=vmem, size = 0x10000, scoped, tag = 'output window, operand 0, single buffered']
    #allocation3 [shape = 's32[1]{0}', space=sflag, size = 0x4, scoped, tag = 'scoped memory for tpu_custom_call.1']
    %7 = vsyncpa [#allocation3], 0
    // Predicated region
    $region2: #{tpu_custom_call.1} parent=1 // pred_check
      _
    $region3: #{tpu_custom_call.1} parent=1 // pred_check_branch
      %9 = sbr.rel (0) target = $region5
    $region4: #{tpu_custom_call.1} parent=1 // pred_region
      _
    $region5: #{tpu_custom_call.1} parent=1 // pred_fallthru
      _
    // Predicated region
    $region6: #{tpu_custom_call.1} parent=1 // pred_check
      _
    $region7: #{tpu_custom_call.1} parent=1 // pred_check_branch
      %11 = sbr.rel (0) target = $region9
    $region8: #{tpu_custom_call.1} parent=1 // pred_region
      _
    $region9: #{tpu_custom_call.1} parent=1 // pred_fallthru
      _
    %v12 = vlaneseq
    %v13 = vshrl.u32 %v12, 7
    %v14 = vadd.s32 %v13, 8
    %v15 = vld [vmem:[%s1] sm:$0xff]
    %v16 = vld [vmem:[%s1 + $0x8] sm:$0xff]
    %v17 = vld [vmem:[%s1 + $0x10] sm:$0xff]
    %v18 = vld [vmem:[%s1 + $0x18] sm:$0xff]
    %v19 = vld [vmem:[%s0] ss:$2 sm:$0x3]
    %v20 = vperm.slane %v19, 0
    %v21 = vperm.slane %v19, 1
    %vm22 = vcmp.eq.s32.totalorder %v13, %v20
    %vm23 = vcmp.eq.s32.totalorder %v13, %v21
    %vm24 = vcmp.eq.s32.totalorder %v14, %v20
    %vm25 = vcmp.eq.s32.totalorder %v14, %v21
    %v26 = vsel %vm22, 1, 0
    %v27 = vsel %vm23, 1, 0
    %v28 = vsel %vm24, 1, 0
    %v29 = vsel %vm25, 1, 0
    %v30 = vcvt.s32.f32 %v26
    %v31 = vcvt.s32.f32 %v27
    %v32 = vcvt.s32.f32 %v28
    %v33 = vcvt.s32.f32 %v29
    %vm34 = vcmask 130048
    %v36 = vsel %vm34, %v15, 0
    %v39 = vsel %vm34, %v16, 0
    %v42 = vsel %vm34, %v17, 0
    %v45 = vsel %vm34, %v18, 0
    %47 = vmatpush.msra.mxu0 0.0
    %48 = vmatpush.msra.mxu0 0.0
    %49 = vmatpush.msra.mxu0 0.0
    %50 = vmatpush.msra.mxu0 0.0
    %51 = vmatpush.msra.mxu0 0.0
    %52 = vmatpush.msra.mxu0 0.0
    %53 = vmatpush.msra.mxu0 0.0
    %54 = vmatpush.msra.mxu0 0.0
    %55 = vmatpush.msra.mxu0 0.0
    %56 = vmatpush.msra.mxu0 0.0
    %57 = vmatpush.msra.mxu0 0.0
    %58 = vmatpush.msra.mxu0 0.0
    %59 = vmatpush.msra.mxu0 0.0
    %60 = vmatpush.msra.mxu0 0.0
    %61 = vmatpush.msra.mxu0 %v32
    %62 = vmatpush.msra.mxu0 %v30
    %63 = vmatmul.f32.gmra.mxu0 %v36
    %v64 = vpop.f32.mrf.mxu0
    %v65 = vadd.f32 0.0, %v64
    %66 = vmatmul.f32.gmra.mxu0 %v39
    %v67 = vpop.f32.mrf.mxu0
    %v68 = vadd.f32 0.0, %v67
    %69 = vmatmul.f32.gmra.mxu0 %v42
    %v70 = vpop.f32.mrf.mxu0
    %v71 = vadd.f32 0.0, %v70
    %72 = vmatmul.f32.gmra.mxu0 %v45
    %v73 = vpop.f32.mrf.mxu0
    %v74 = vadd.f32 0.0, %v73
    %75 = vdwg.mxu0
    %76 = vmatpush.msra.mxu0 0.0
    %77 = vmatpush.msra.mxu0 0.0
    %78 = vmatpush.msra.mxu0 0.0
    %79 = vmatpush.msra.mxu0 0.0
    %80 = vmatpush.msra.mxu0 0.0
    %81 = vmatpush.msra.mxu0 0.0
    %82 = vmatpush.msra.mxu0 0.0
    %83 = vmatpush.msra.mxu0 0.0
    %84 = vmatpush.msra.mxu0 0.0
    %85 = vmatpush.msra.mxu0 0.0
    %86 = vmatpush.msra.mxu0 0.0
    %87 = vmatpush.msra.mxu0 0.0
    %88 = vmatpush.msra.mxu0 0.0
    %89 = vmatpush.msra.mxu0 0.0
    %90 = vmatpush.msra.mxu0 %v33
    %91 = vmatpush.msra.mxu0 %v31
    %92 = vmatmul.f32.gmra.mxu0 %v36
    %v93 = vpop.f32.mrf.mxu0
    %v94 = vadd.f32 0.0, %v93
    %95 = vmatmul.f32.gmra.mxu0 %v39
    %v96 = vpop.f32.mrf.mxu0
    %v97 = vadd.f32 0.0, %v96
    %98 = vmatmul.f32.gmra.mxu0 %v42
    %v99 = vpop.f32.mrf.mxu0
    %v100 = vadd.f32 0.0, %v99
    %101 = vmatmul.f32.gmra.mxu0 %v45
    %v102 = vpop.f32.mrf.mxu0
    %v103 = vadd.f32 0.0, %v102
    %104 = vdwg.mxu0
    %105 = vst [vmem:[#allocation2] sm:$0xff] %v65
    %106 = vst [vmem:[#allocation2 + $0x8] sm:$0xff] %v94
    %107 = vst [vmem:[#allocation2 + $0x10] sm:$0xff] %v68
    %108 = vst [vmem:[#allocation2 + $0x18] sm:$0xff] %v97
    %109 = vst [vmem:[#allocation2 + $0x20] sm:$0xff] %v71
    %110 = vst [vmem:[#allocation2 + $0x28] sm:$0xff] %v100
    %111 = vst [vmem:[#allocation2 + $0x30] sm:$0xff] %v74
    %112 = vst [vmem:[#allocation2 + $0x38] sm:$0xff] %v103
    %s113 = scalar_lea.vmem %s0, 1
    %v114 = vld [vmem:[%s113] ss:$2 sm:$0x3]
    %v115 = vperm.slane %v114, 0
    %v116 = vperm.slane %v114, 1
    %vm117 = vcmp.eq.s32.totalorder %v13, %v115
    %vm118 = vcmp.eq.s32.totalorder %v13, %v116
    %vm119 = vcmp.eq.s32.totalorder %v14, %v115
    %vm120 = vcmp.eq.s32.totalorder %v14, %v116
    %v121 = vsel %vm117, 1, 0
    %v122 = vsel %vm118, 1, 0
    %v123 = vsel %vm119, 1, 0
    %v124 = vsel %vm120, 1, 0
    %v125 = vcvt.s32.f32 %v121
    %v126 = vcvt.s32.f32 %v122
    %v127 = vcvt.s32.f32 %v123
    %v128 = vcvt.s32.f32 %v124
    %129 = vmatpush.msra.mxu0 0.0
    %130 = vmatpush.msra.mxu0 0.0
    %131 = vmatpush.msra.mxu0 0.0
    %132 = vmatpush.msra.mxu0 0.0
    %133 = vmatpush.msra.mxu0 0.0
    %134 = vmatpush.msra.mxu0 0.0
    %135 = vmatpush.msra.mxu0 0.0
    %136 = vmatpush.msra.mxu0 0.0
    %137 = vmatpush.msra.mxu0 0.0
    %138 = vmatpush.msra.mxu0 0.0
    %139 = vmatpush.msra.mxu0 0.0
    %140 = vmatpush.msra.mxu0 0.0
    %141 = vmatpush.msra.mxu0 0.0
    %142 = vmatpush.msra.mxu0 0.0
    %143 = vmatpush.msra.mxu0 %v127
    %144 = vmatpush.msra.mxu0 %v125
    %145 = vmatmul.f32.gmra.mxu0 %v36
    %v146 = vpop.f32.mrf.mxu0
    %v147 = vadd.f32 0.0, %v146
    %148 = vmatmul.f32.gmra.mxu0 %v39
    %v149 = vpop.f32.mrf.mxu0
    %v150 = vadd.f32 0.0, %v149
    %151 = vmatmul.f32.gmra.mxu0 %v42
    %v152 = vpop.f32.mrf.mxu0
    %v153 = vadd.f32 0.0, %v152
    %154 = vmatmul.f32.gmra.mxu0 %v45
    %v155 = vpop.f32.mrf.mxu0
    %v156 = vadd.f32 0.0, %v155
    %157 = vdwg.mxu0
    %158 = vmatpush.msra.mxu0 0.0
    %159 = vmatpush.msra.mxu0 0.0
    %160 = vmatpush.msra.mxu0 0.0
    %161 = vmatpush.msra.mxu0 0.0
    %162 = vmatpush.msra.mxu0 0.0
    %163 = vmatpush.msra.mxu0 0.0
    %164 = vmatpush.msra.mxu0 0.0
    %165 = vmatpush.msra.mxu0 0.0
    %166 = vmatpush.msra.mxu0 0.0
    %167 = vmatpush.msra.mxu0 0.0
    %168 = vmatpush.msra.mxu0 0.0
    %169 = vmatpush.msra.mxu0 0.0
    %170 = vmatpush.msra.mxu0 0.0
    %171 = vmatpush.msra.mxu0 0.0
    %172 = vmatpush.msra.mxu0 %v128
    %173 = vmatpush.msra.mxu0 %v126
    %174 = vmatmul.f32.gmra.mxu0 %v36
    %v175 = vpop.f32.mrf.mxu0
    %v176 = vadd.f32 0.0, %v175
    %177 = vmatmul.f32.gmra.mxu0 %v39
    %v178 = vpop.f32.mrf.mxu0
    %v179 = vadd.f32 0.0, %v178
    %180 = vmatmul.f32.gmra.mxu0 %v42
    %v181 = vpop.f32.mrf.mxu0
    %v182 = vadd.f32 0.0, %v181
    %183 = vmatmul.f32.gmra.mxu0 %v45
    %v184 = vpop.f32.mrf.mxu0
    %v185 = vadd.f32 0.0, %v184
    %186 = vdwg.mxu0
    %s187 = scalar_lea.vmem [#allocation2], 64
    %188 = vst [vmem:[%s187] sm:$0xff] %v147
    %189 = vst [vmem:[%s187 + $0x8] sm:$0xff] %v176
    %190 = vst [vmem:[%s187 + $0x10] sm:$0xff] %v150
    %191 = vst [vmem:[%s187 + $0x18] sm:$0xff] %v179
    %192 = vst [vmem:[%s187 + $0x20] sm:$0xff] %v153
    %193 = vst [vmem:[%s187 + $0x28] sm:$0xff] %v182
    %194 = vst [vmem:[%s187 + $0x30] sm:$0xff] %v156
    %195 = vst [vmem:[%s187 + $0x38] sm:$0xff] %v185
    // Predicated region
    $region10: #{tpu_custom_call.1} parent=1 // pred_check
      _
    $region11: #{tpu_custom_call.1} parent=1 // pred_check_branch
      %197 = sbr.rel (0) target = $region13
    $region12: #{tpu_custom_call.1} parent=1 // pred_region
      %199 = vsyncadd [#allocation3], 0
      %s200 = sshll.u32 [#allocation2], 4
      %s201 = int_to_ptr.vmem [resolvable:$true] %s200
      %s202 = sshll.u32 %s2, 4
      %s203 = int_to_ptr.hbm [resolvable:$true] %s202
      %208 = dma.vmem_to_hbm [thread:$0]  %s201, 2048, %s203, [#allocation3], 256, 256, 16
    $region13: #{tpu_custom_call.1} parent=1 // pred_fallthru
      _
    // Predicated region
    $region14: #{tpu_custom_call.1} parent=1 // pred_check
      _
    $region15: #{tpu_custom_call.1} parent=1 // pred_check_branch
      %210 = sbr.rel (0) target = $region17
    $region16: #{tpu_custom_call.1} parent=1 // pred_region
      %212 = dma.done [#allocation3], 2048
    $region17: #{tpu_custom_call.1} parent=1 // pred_fallthru
      _
    %213 = vsyncpa [#allocation3], 1

</llo_original>
